<compile_context>
chip_gen: v7x
topology: tpu7x:2x2x1
jax: 0.10.0
libtpu: 0.0.40
codegen_flags: <defaults>
</compile_context>

<pallas_src>
import jax
import jax.numpy as jnp
from jax.experimental import pallas as pl
from jax.experimental.pallas import tpu as pltpu

KERNEL_SIZE = 7   # (1, 7) temporal kernel
DILATION = 2      # dilation_factor = 2 along W


def _dilated_matmul_kernel(w_ref, b_ref, x_ref, o_ref):
    """w_ref: (cout*W_out, cin*W)  folded conv-as-matmul weight (VMEM resident)
       b_ref: (cout*W_out, 1)      float32 bias, repeated per output position
       x_ref: (cin*W, TM)          input tile; TM rows of N*H on the 128-lane axis
       o_ref: (cout*W_out, TM)     lane-dense output tile
    """
    acc = jnp.dot(w_ref[...], x_ref[...], preferred_element_type=jnp.float32)
    o_ref[...] = (acc + b_ref[...]).astype(o_ref.dtype)


def _round_up(x, m):
    return ((x + m - 1) // m) * m


def _choose_tile_m(m, k_in, r_out, itemsize, budget_bytes=24 * 1024 * 1024, max_tm=8192):
    """Largest lane tile (multiple of 128) whose double-buffered in+out blocks fit the budget,
    counting (8,128) VMEM layout padding on the sublane axis; keeps >=2 grid steps if possible."""
    per_lane = itemsize * 2 * (_round_up(k_in, 8) + _round_up(r_out, 8))
    tm = max(128, (budget_bytes // max(per_lane, 1)) // 128 * 128)
    tm = min(tm, max_tm)
    m128 = _round_up(m, 128)
    tm = min(tm, m128)
    if m128 >= 256:   # at least two grid steps: pipeline overlap + both TensorCores on v7x
        tm = min(tm, max(128, (m128 // 2) // 128 * 128))
    return tm


def _fold_weight(weight, w_in, w_out):
    """Scatter PyTorch conv weight (cout, cin, 1, 7) into a dense (cout*W_out, cin*W) matrix B
    with B[co*W_out + t, ci*W + w] = weight[co, ci, 0, k]  iff  w == t + DILATION*k."""
    cout, cin = weight.shape[0], weight.shape[1]
    w2 = weight[:, :, 0, :]                                            # (cout, cin, 7)
    pos = jnp.arange(w_out)[:, None] + DILATION * jnp.arange(KERNEL_SIZE)[None, :]
    onehot = jax.nn.one_hot(pos, w_in, dtype=w2.dtype)                 # (W_out, 7, W)
    b_mat = jnp.einsum('cik,tkw->ctiw', w2, onehot)                    # (cout, W_out, cin, W)
    return b_mat.reshape(cout * w_out, cin * w_in)


def dilated_1d_forward(x, weight, bias):
    """x: (N, cin, H, W)  weight: (cout, cin, 1, 7)  bias: (cout,)
    Returns (N, cout, H, W_out) with W_out = W - DILATION*(KERNEL_SIZE-1), matching
    PyTorch nn.Conv2d(cin, cout, (1, 7), dilation=(1, 2)) (no padding, stride 1)."""
    N, cin, H, W = x.shape
    cout = weight.shape[0]
    W_out = W - DILATION * (KERNEL_SIZE - 1)
    assert W_out > 0, "input W too small for kernel/dilation"
    M = N * H
    K_in = cin * W
    R_out = cout * W_out

    # TODO(synk): the two HBM transpose passes (NCHW -> (cin*W, M) and back) disappear if the
    # surrounding model carries channels/time-major activations; kept to honor the NCHW contract.
    x_r = jnp.transpose(x, (1, 3, 0, 2)).reshape(K_in, M)

    # TODO(synk): B is O(cin*W * cout*W_out); ideal for the short temporal windows this module is
    # used with — for very long W switch to a K=7*cin tap-fold instead of the zero-scattered B.
    w_mat = _fold_weight(weight, W, W_out).astype(x.dtype)             # (R_out, K_in)
    b_col = jnp.repeat(bias.astype(jnp.float32), W_out).reshape(R_out, 1)

    itemsize = jnp.dtype(x.dtype).itemsize
    tm = _choose_tile_m(M, K_in, R_out, itemsize)
    M_pad = _round_up(M, tm)
    if M_pad != M:
        x_r = jnp.pad(x_r, ((0, 0), (0, M_pad - M)))
    grid = (M_pad // tm,)

    flops = 2 * R_out * K_in * M_pad
    bytes_accessed = itemsize * (K_in * M_pad + R_out * M_pad + w_mat.size) + 4 * R_out

    out2d = pl.pallas_call(
        _dilated_matmul_kernel,
        out_shape=jax.ShapeDtypeStruct((R_out, M_pad), x.dtype),
        grid_spec=pltpu.PrefetchScalarGridSpec(
            num_scalar_prefetch=0,
            grid=grid,
            in_specs=[
                pl.BlockSpec((R_out, K_in), lambda i: (0, 0)),   # folded weight, resident
                pl.BlockSpec((R_out, 1), lambda i: (0, 0)),      # bias column, resident
                pl.BlockSpec((K_in, tm), lambda i: (0, i)),      # input tile (lanes = rows of N*H)
            ],
            out_specs=pl.BlockSpec((R_out, tm), lambda i: (0, i)),
        ),
        compiler_params=pltpu.CompilerParams(
            dimension_semantics=("parallel",),       # megacore sharding on v7x; harmless elsewhere
            vmem_limit_bytes=48 * 1024 * 1024,       # fits v7x's 64 MiB physical VMEM
        ),
        cost_estimate=pl.CostEstimate(
            flops=flops, transcendentals=0, bytes_accessed=bytes_accessed),
    )(w_mat, b_col, x_r)

    out = out2d[:, :M].reshape(cout, W_out, N, H)
    return jnp.transpose(out, (2, 0, 3, 1))


def _reference(x, weight, bias):
    # Pure-JAX reference: cross-correlation with rhs (kernel) dilation, NCHW.
    y = jax.lax.conv_general_dilated(
        x, weight,
        window_strides=(1, 1),
        padding="VALID",
        rhs_dilation=(1, DILATION),
        dimension_numbers=("NCHW", "OIHW", "NCHW"),
    )
    return y + bias.reshape(1, -1, 1, 1)


if __name__ == "__main__":
    key = jax.random.PRNGKey(0)
    k_x, k_w, k_b = jax.random.split(key, 3)

    N, cin, cout, H, W = 2, 4, 8, 4, 20   # W_out = 20 - 2*6 = 8

    x = jax.random.normal(k_x, (N, cin, H, W), dtype=jnp.float32)
    fan_in = cin * 1 * KERNEL_SIZE
    bound = 1.0 / (fan_in ** 0.5)
    weight = jax.random.uniform(
        k_w, (cout, cin, 1, KERNEL_SIZE), dtype=jnp.float32,
        minval=-bound, maxval=bound)
    bias = jax.random.uniform(
        k_b, (cout,), dtype=jnp.float32, minval=-bound, maxval=bound)

    out = jax.block_until_ready(dilated_1d_forward(x, weight, bias))

    ref = _reference(x, weight, bias)
    assert out.shape == ref.shape == (N, cout, H, W - DILATION * (KERNEL_SIZE - 1))
    assert jnp.allclose(out, ref, atol=1e-4, rtol=1e-4)

    print("KERNEL_OK")
</pallas_src>

<mosaic_0001>
module attributes {stable_mosaic.version = 11 : i64} {
  func.func @_dilated_matmul_kernel(%arg0: i32, %arg1: memref<64x80xf32, #tpu.memory_space<vmem>>, %arg2: memref<64x1xf32, #tpu.memory_space<vmem>>, %arg3: memref<80x128xf32, #tpu.memory_space<vmem>>, %arg4: memref<64x128xf32, #tpu.memory_space<vmem>>) attributes {dimension_semantics = [#tpu.dimension_semantics<parallel>], iteration_bounds = array<i64: 1>, scalar_prefetch = 0 : i64, scratch_operands = 0 : i64, tpu.core_type = #tpu.core_type<tc>, window_params = [{pipeline_mode = #tpu.pipeline_mode<synchronous>, transform_indices = @transform_0, window_bounds = array<i64: 64, 80>}, {pipeline_mode = #tpu.pipeline_mode<synchronous>, transform_indices = @transform_1, window_bounds = array<i64: 64, 1>}, {transform_indices = @transform_2, window_bounds = array<i64: 80, 128>}, {transform_indices = @transform_3, window_bounds = array<i64: 64, 128>}]} {
    %c0 = arith.constant 0 : index
    %c0_0 = arith.constant 0 : index
    %0 = vector.load %arg1[%c0, %c0_0] : memref<64x80xf32, #tpu.memory_space<vmem>>, vector<64x80xf32>
    %c0_1 = arith.constant 0 : index
    %c0_2 = arith.constant 0 : index
    %1 = vector.load %arg3[%c0_1, %c0_2] : memref<80x128xf32, #tpu.memory_space<vmem>>, vector<80x128xf32>
    %cst = arith.constant dense<0.000000e+00> : vector<64x128xf32>
    %2 = tpu.matmul %0, %1, %cst {dimension_numbers = #tpu.dot_dimension_numbers<[1], [0], [0], [1], [0, 0, 1, 1], [], []>} : vector<64x80xf32>, vector<80x128xf32>, vector<64x128xf32> -> vector<64x128xf32>
    %c0_3 = arith.constant 0 : index
    %c0_4 = arith.constant 0 : index
    %3 = vector.load %arg2[%c0_3, %c0_4] : memref<64x1xf32, #tpu.memory_space<vmem>>, vector<64x1xf32>
    %4 = vector.broadcast %3 : vector<64x1xf32> to vector<64x128xf32>
    %5 = arith.addf %2, %4 : vector<64x128xf32>
    %c0_5 = arith.constant 0 : index
    %c0_6 = arith.constant 0 : index
    %6 = vector.load %arg4[%c0_5, %c0_6] : memref<64x128xf32, #tpu.memory_space<vmem>>, vector<64x128xf32>
    tpu.vector_store %arg4[%c0_5, %c0_6], %5 {strides = array<i32>} : memref<64x128xf32, #tpu.memory_space<vmem>>, vector<64x128xf32>,
    return
  }
  func.func @transform_0(%arg0: i32) -> (i32, i32) {
    %c0_i32 = arith.constant 0 : i32
    %c0_i32_0 = arith.constant 0 : i32
    %c0_i32_1 = arith.constant 0 : i32
    return %c0_i32, %c0_i32_0 : i32, i32
  }
  func.func @transform_1(%arg0: i32) -> (i32, i32) {
    %c0_i32 = arith.constant 0 : i32
    %c0_i32_0 = arith.constant 0 : i32
    %c0_i32_1 = arith.constant 0 : i32
    return %c0_i32, %c0_i32_0 : i32, i32
  }
  func.func @transform_2(%arg0: i32) -> (i32, i32) {
    %c0_i32 = arith.constant 0 : i32
    %c0_i32_0 = arith.constant 0 : i32
    return %c0_i32, %arg0 : i32, i32
  }
  func.func @transform_3(%arg0: i32) -> (i32, i32) {
    %c0_i32 = arith.constant 0 : i32
    %c0_i32_0 = arith.constant 0 : i32
    return %c0_i32, %arg0 : i32, i32
  }
}

</mosaic_0001>

<llo_original>
// kernel: tpu_custom_call.1
$region0: #{tpu_custom_call.1}
  #allocation0 [shape = 'u32[]', space=smem, size = 0x4, offset = 0x4, fixed_abs, tag = 'smem constant byte address 0x4 - core index']
  #allocation1 [shape = 'u32[144,128]{1,0:T(1,128)}', space=vmem, size = 0x12000, scoped, tag = 'internal scratch']
  %s0 = inlined_call_operand.vmem [shape: f32[64,80], index: 0, kind: input, shape index: {}]
  %s1 = inlined_call_operand.vmem [shape: f32[64,1], index: 1, kind: input, shape index: {}]
  %s2 = inlined_call_operand.hbm [shape: f32[80,128], index: 2, kind: input, shape index: {}]
  %s3 = inlined_call_operand.hbm [shape: f32[64,128], index: 3, kind: output, shape index: {}]
  %s4 = sld [smem:[#allocation0]]
  $region26: #{tpu_custom_call.1} parent=0
    _
  %s6 = ssub.s32 1, %s4
  %s7 = scalar_select 0, %s6, %s4
  $region1: #{tpu_custom_call.1} parent=0
    #allocation2 [shape = 'u8[40960]{0}', space=vmem, size = 0xa000, scoped, tag = 'input window, operand 2, single buffered']
    #allocation3 [shape = 's32[1]{0}', space=sflag, size = 0x4, scoped, tag = 'scoped memory for tpu_custom_call.1']
    #allocation4 [shape = 's32[1]{0}', space=sflag, size = 0x4, scoped, tag = 'scoped memory for tpu_custom_call.1']
    #allocation5 [shape = 'u8[32768]{0}', space=vmem, size = 0x8000, scoped, tag = 'output window, operand 0, single buffered']
    %8 = vsyncpa [#allocation3], 0
    %9 = vsyncpa [#allocation4], 0
    // Predicated region
    $region2: #{tpu_custom_call.1} parent=1 // pred_check
      _
    $region3: #{tpu_custom_call.1} parent=1 // pred_check_branch
      %11 = sbr.rel (0) target = $region5
    $region4: #{tpu_custom_call.1} parent=1 // pred_region
      _
    $region5: #{tpu_custom_call.1} parent=1 // pred_fallthru
      _
    // Predicated region
    $region6: #{tpu_custom_call.1} parent=1 // pred_check
      _
    $region7: #{tpu_custom_call.1} parent=1 // pred_check_branch
      %13 = sbr.rel (0) target = $region9
    $region8: #{tpu_custom_call.1} parent=1 // pred_region
      _
    $region9: #{tpu_custom_call.1} parent=1 // pred_fallthru
      _
    // Predicated region
    $region10: #{tpu_custom_call.1} parent=1 // pred_check
      _
    $region11: #{tpu_custom_call.1} parent=1 // pred_check_branch
      %15 = sbr.rel (0) target = $region13
    $region12: #{tpu_custom_call.1} parent=1 // pred_region
      %s17 = ssub.s32 1280, 1280
      %18 = vsyncadd [#allocation3], %s17
      %s19 = sshll.u32 [#allocation2], 4
      %s20 = int_to_ptr.vmem [resolvable:$true] %s19
      %25 = dma.hbm_to_vmem [thread:$0]  %s2, 1280, %s20, [#allocation3], 128, 128, 8
    $region13: #{tpu_custom_call.1} parent=1 // pred_fallthru
      _
    // Predicated region
    $region14: #{tpu_custom_call.1} parent=1 // pred_check
      _
    $region15: #{tpu_custom_call.1} parent=1 // pred_check_branch
      %27 = sbr.rel (0) target = $region17
    $region16: #{tpu_custom_call.1} parent=1 // pred_region
      %28 = dma.done [#allocation3], 1280
    $region17: #{tpu_custom_call.1} parent=1 // pred_fallthru
      _
    %v29 = vld [vmem:[%s0] sm:$0xff]
    %v30 = vld [vmem:[%s0 + $0x8] sm:$0xff]
    %v31 = vld [vmem:[%s0 + $0x10] sm:$0xff]
    %v32 = vld [vmem:[%s0 + $0x18] sm:$0xff]
    %v33 = vld [vmem:[%s0 + $0x20] sm:$0xff]
    %v34 = vld [vmem:[%s0 + $0x28] sm:$0xff]
    %v35 = vld [vmem:[%s0 + $0x30] sm:$0xff]
    %v36 = vld [vmem:[%s0 + $0x38] sm:$0xff]
    %v37 = vld [vmem:[#allocation2] sm:$0xff]
    %v38 = vld [vmem:[#allocation2 + $0x8] sm:$0xff]
    %v39 = vld [vmem:[#allocation2 + $0x10] sm:$0xff]
    %v40 = vld [vmem:[#allocation2 + $0x18] sm:$0xff]
    %v41 = vld [vmem:[#allocation2 + $0x20] sm:$0xff]
    %v42 = vld [vmem:[#allocation2 + $0x28] sm:$0xff]
    %v43 = vld [vmem:[#allocation2 + $0x30] sm:$0xff]
    %v44 = vld [vmem:[#allocation2 + $0x38] sm:$0xff]
    %v45 = vld [vmem:[#allocation2 + $0x40] sm:$0xff]
    %v46 = vld [vmem:[#allocation2 + $0x48] sm:$0xff]
    %v47 = vld [vmem:[%s1] sm:$0xff]
    %v48 = vld [vmem:[%s1 + $0x8] sm:$0xff]
    %v49 = vld [vmem:[%s1 + $0x10] sm:$0xff]
    %v50 = vld [vmem:[%s1 + $0x18] sm:$0xff]
    %v51 = vld [vmem:[%s1 + $0x20] sm:$0xff]
    %v52 = vld [vmem:[%s1 + $0x28] sm:$0xff]
    %v53 = vld [vmem:[%s1 + $0x30] sm:$0xff]
    %v54 = vld [vmem:[%s1 + $0x38] sm:$0xff]
    %56 = vset.pattern.permute.xlu0 0
    %57 = vperm.xlu0 %56, %v47
    %v58 = vpop.permute.xlu0 %57
    %61 = vset.pattern.permute.xlu0 0
    %62 = vperm.xlu0 %61, %v48
    %v63 = vpop.permute.xlu0 %62
    %66 = vset.pattern.permute.xlu0 0
    %67 = vperm.xlu0 %66, %v49
    %v68 = vpop.permute.xlu0 %67
    %71 = vset.pattern.permute.xlu0 0
    %72 = vperm.xlu0 %71, %v50
    %v73 = vpop.permute.xlu0 %72
    %76 = vset.pattern.permute.xlu0 0
    %77 = vperm.xlu0 %76, %v51
    %v78 = vpop.permute.xlu0 %77
    %81 = vset.pattern.permute.xlu0 0
    %82 = vperm.xlu0 %81, %v52
    %v83 = vpop.permute.xlu0 %82
    %86 = vset.pattern.permute.xlu0 0
    %87 = vperm.xlu0 %86, %v53
    %v88 = vpop.permute.xlu0 %87
    %91 = vset.pattern.permute.xlu0 0
    %92 = vperm.xlu0 %91, %v54
    %v93 = vpop.permute.xlu0 %92
    %vm95 = vcmask 654336
    %v97 = vsel %vm95, %v29, 0
    %v100 = vsel %vm95, %v30, 0
    %v103 = vsel %vm95, %v31, 0
    %v106 = vsel %vm95, %v32, 0
    %v109 = vsel %vm95, %v33, 0
    %v112 = vsel %vm95, %v34, 0
    %v115 = vsel %vm95, %v35, 0
    %v118 = vsel %vm95, %v36, 0
    %120 = vmatprep.subr.mxu0 0.0
    %121 = vmatpush1.msra.mxu0 %v37
    %122 = vmatprep.subr.mxu0 0.0
    %123 = vmatpush1.msra.mxu0 %v38
    %124 = vmatprep.subr.mxu0 0.0
    %125 = vmatpush1.msra.mxu0 %v39
    %126 = vmatprep.subr.mxu0 0.0
    %127 = vmatpush1.msra.mxu0 %v40
    %128 = vmatprep.subr.mxu0 0.0
    %129 = vmatpush1.msra.mxu0 %v41
    %130 = vmatprep.subr.mxu0 0.0
    %131 = vmatpush1.msra.mxu0 %v42
    %132 = vmatprep.subr.mxu0 0.0
    %133 = vmatpush1.msra.mxu0 %v43
    %134 = vmatprep.subr.mxu0 0.0
    %135 = vmatpush1.msra.mxu0 %v44
    %136 = vmatprep.subr.mxu0 0.0
    %137 = vmatpush1.msra.mxu0 %v45
    %138 = vmatprep.subr.mxu0 0.0
    %139 = vmatpush1.msra.mxu0 %v46
    %140 = vmatprep.subr.mxu0 0.0
    %141 = vmatpush1.msra.mxu0 0.0
    %142 = vmatprep.subr.mxu0 0.0
    %143 = vmatpush1.msra.mxu0 0.0
    %144 = vmatprep.subr.mxu0 0.0
    %145 = vmatpush1.msra.mxu0 0.0
    %146 = vmatprep.subr.mxu0 0.0
    %147 = vmatpush1.msra.mxu0 0.0
    %148 = vmatprep.subr.mxu0 0.0
    %149 = vmatpush1.msra.mxu0 0.0
    %150 = vmatprep.subr.mxu0 0.0
    %151 = vmatpush1.msra.mxu0 0.0
    %152 = vmatprep.subr.mxu0 0.0
    %153 = vmatpush1.msra.mxu0 0.0
    %154 = vmatprep.subr.mxu0 0.0
    %155 = vmatpush1.msra.mxu0 0.0
    %156 = vmatprep.subr.mxu0 0.0
    %157 = vmatpush1.msra.mxu0 0.0
    %158 = vmatprep.subr.mxu0 0.0
    %159 = vmatpush1.msra.mxu0 0.0
    %160 = vmatprep.subr.mxu0 0.0
    %161 = vmatpush1.msra.mxu0 0.0
    %162 = vmatprep.subr.mxu0 0.0
    %163 = vmatpush1.msra.mxu0 0.0
    %164 = vmatprep.subr.mxu0 0.0
    %165 = vmatpush1.msra.mxu0 0.0
    %166 = vmatprep.subr.mxu0 0.0
    %167 = vmatpush1.msra.mxu0 0.0
    %168 = vmatprep.subr.mxu0 0.0
    %169 = vmatpush1.msra.mxu0 0.0
    %170 = vmatprep.subr.mxu0 0.0
    %171 = vmatpush1.msra.mxu0 0.0
    %172 = vmatprep.subr.mxu0 0.0
    %173 = vmatpush1.msra.mxu0 0.0
    %174 = vmatprep.subr.mxu0 0.0
    %175 = vmatpush1.msra.mxu0 0.0
    %176 = vmatprep.subr.mxu0 0.0
    %177 = vmatpush1.msra.mxu0 0.0
    %178 = vmatprep.subr.mxu0 0.0
    %179 = vmatpush1.msra.mxu0 0.0
    %180 = vmatprep.subr.mxu0 0.0
    %181 = vmatpush1.msra.mxu0 0.0
    %182 = vmatprep.subr.mxu0 0.0
    %183 = vmatpush1.msra.mxu0 0.0
    %184 = vmatprep.mubr.f32.mxu0 0.0
    %185 = vmatmul.mubr.f32.gmra.mrb[0].mxu0 %v97
    %v186 = vpop.f32.mrb[0].mxu0
    %v187 = vadd.f32 %v58, %v186
    %v188 = vpop.f32.mrb[0].mxu0
    %189 = vmatprep.mubr.f32.mxu0 0.0
    %190 = vmatmul.mubr.f32.gmra.mrb[0].mxu0 %v100
    %v191 = vpop.f32.mrb[0].mxu0
    %v192 = vadd.f32 %v63, %v191
    %v193 = vpop.f32.mrb[0].mxu0
    %194 = vmatprep.mubr.f32.mxu0 0.0
    %195 = vmatmul.mubr.f32.gmra.mrb[0].mxu0 %v103
    %v196 = vpop.f32.mrb[0].mxu0
    %v197 = vadd.f32 %v68, %v196
    %v198 = vpop.f32.mrb[0].mxu0
    %199 = vmatprep.mubr.f32.mxu0 0.0
    %200 = vmatmul.mubr.f32.gmra.mrb[0].mxu0 %v106
    %v201 = vpop.f32.mrb[0].mxu0
    %v202 = vadd.f32 %v73, %v201
    %v203 = vpop.f32.mrb[0].mxu0
    %204 = vmatprep.mubr.f32.mxu0 0.0
    %205 = vmatmul.mubr.f32.gmra.mrb[0].mxu0 %v109
    %v206 = vpop.f32.mrb[0].mxu0
    %v207 = vadd.f32 %v78, %v206
    %v208 = vpop.f32.mrb[0].mxu0
    %209 = vmatprep.mubr.f32.mxu0 0.0
    %210 = vmatmul.mubr.f32.gmra.mrb[0].mxu0 %v112
    %v211 = vpop.f32.mrb[0].mxu0
    %v212 = vadd.f32 %v83, %v211
    %v213 = vpop.f32.mrb[0].mxu0
    %214 = vmatprep.mubr.f32.mxu0 0.0
    %215 = vmatmul.mubr.f32.gmra.mrb[0].mxu0 %v115
    %v216 = vpop.f32.mrb[0].mxu0
    %v217 = vadd.f32 %v88, %v216
    %v218 = vpop.f32.mrb[0].mxu0
    %219 = vmatprep.mubr.f32.mxu0 0.0
    %220 = vmatmul.mubr.f32.gmra.mrb[0].mxu0 %v118
    %v221 = vpop.f32.mrb[0].mxu0
    %v222 = vadd.f32 %v93, %v221
    %v223 = vpop.f32.mrb[0].mxu0
    %224 = vdwg.mxu0
    %225 = vst [vmem:[#allocation5] sm:$0xff] %v187
    %226 = vst [vmem:[#allocation5 + $0x8] sm:$0xff] %v192
    %227 = vst [vmem:[#allocation5 + $0x10] sm:$0xff] %v197
    %228 = vst [vmem:[#allocation5 + $0x18] sm:$0xff] %v202
    %229 = vst [vmem:[#allocation5 + $0x20] sm:$0xff] %v207
    %230 = vst [vmem:[#allocation5 + $0x28] sm:$0xff] %v212
    %231 = vst [vmem:[#allocation5 + $0x30] sm:$0xff] %v217
    %232 = vst [vmem:[#allocation5 + $0x38] sm:$0xff] %v222
    // Predicated region
    $region18: #{tpu_custom_call.1} parent=1 // pred_check
      _
    $region19: #{tpu_custom_call.1} parent=1 // pred_check_branch
      %234 = sbr.rel (0) target = $region21
    $region20: #{tpu_custom_call.1} parent=1 // pred_region
      %s236 = ssub.s32 1024, 1024
      %237 = vsyncadd [#allocation4], %s236
      %s238 = sshll.u32 [#allocation5], 4
      %s239 = int_to_ptr.vmem [resolvable:$true] %s238
      %244 = dma.vmem_to_hbm [thread:$0]  %s239, 1024, %s3, [#allocation4], 128, 128, 8
    $region21: #{tpu_custom_call.1} parent=1 // pred_fallthru
      _
    // Predicated region
    $region22: #{tpu_custom_call.1} parent=1 // pred_check
      _
    $region23: #{tpu_custom_call.1} parent=1 // pred_check_branch
      %246 = sbr.rel (0) target = $region25
    $region24: #{tpu_custom_call.1} parent=1 // pred_region
      %247 = dma.done [#allocation4], 1024
    $region25: #{tpu_custom_call.1} parent=1 // pred_fallthru
      _
    %248 = vsyncpa [#allocation3], 1
    %249 = vsyncpa [#allocation4], 1

</llo_original>
